<compile_context>
chip_gen: v6e
topology: v6e:2x2x1
jax: 0.10.0
libtpu: 0.0.40
codegen_flags: <defaults>
</compile_context>

<pallas_src>
import jax
import jax.numpy as jnp
from jax.experimental import pallas as pl
from jax.experimental.pallas import tpu as pltpu  # noqa: F401  (TPU backend)


def _bitshift_kernel(w_ref, x_ref, y_ref, z_ref,
                     o0_ref, o1_ref, o2_ref, o3_ref):
    # Four constant-immediate shifts; each is a single VPU op on one vreg.
    o0_ref[...] = x_ref[...] << 2   # x << 2
    o1_ref[...] = y_ref[...] >> 3   # y >> 3
    o2_ref[...] = z_ref[...] << 1   # z << 1
    o3_ref[...] = w_ref[...] >> 4   # w >> 4


@jax.jit
def bitshift(w, x, y, z):
    shape = jax.ShapeDtypeStruct((1, 3), jnp.int32)
    spec = pl.BlockSpec((1, 3), lambda: (0, 0))
    return pl.pallas_call(
        _bitshift_kernel,
        grid=(),
        in_specs=[spec, spec, spec, spec],
        out_specs=(spec, spec, spec, spec),
        out_shape=(shape, shape, shape, shape),
    )(w, x, y, z)


if __name__ == "__main__":
    key = jax.random.PRNGKey(0)
    kw, kx, ky, kz = jax.random.split(key, 4)
    # torch.empty(1, 3).uniform_(0, 100).to(torch.int32)  ->  int32 in [0, 100)
    w = jax.random.randint(kw, (1, 3), 0, 100, dtype=jnp.int32)
    x = jax.random.randint(kx, (1, 3), 0, 100, dtype=jnp.int32)
    y = jax.random.randint(ky, (1, 3), 0, 100, dtype=jnp.int32)
    z = jax.random.randint(kz, (1, 3), 0, 100, dtype=jnp.int32)

    outs = jax.block_until_ready(bitshift(w, x, y, z))

    # Reference check (jnp >> on int32 is arithmetic shift, same as torch).
    ref = (x << 2, y >> 3, z << 1, w >> 4)
    for got, want in zip(outs, ref):
        assert got.dtype == jnp.int32
        assert got.shape == (1, 3)
        assert jnp.array_equal(got, want), (got, want)

    print("KERNEL_OK")
</pallas_src>

<mosaic_0001>
module attributes {stable_mosaic.version = 11 : i64} {
  func.func @_bitshift_kernel(%arg0: memref<1x3xi32, #tpu.memory_space<vmem>>, %arg1: memref<1x3xi32, #tpu.memory_space<vmem>>, %arg2: memref<1x3xi32, #tpu.memory_space<vmem>>, %arg3: memref<1x3xi32, #tpu.memory_space<vmem>>, %arg4: memref<1x3xi32, #tpu.memory_space<vmem>>, %arg5: memref<1x3xi32, #tpu.memory_space<vmem>>, %arg6: memref<1x3xi32, #tpu.memory_space<vmem>>, %arg7: memref<1x3xi32, #tpu.memory_space<vmem>>) attributes {dimension_semantics = [], scalar_prefetch = 0 : i64, scratch_operands = 0 : i64, tpu.core_type = #tpu.core_type<tc>} {
    %c0 = arith.constant 0 : index
    %c0_0 = arith.constant 0 : index
    %0 = vector.load %arg1[%c0, %c0_0] : memref<1x3xi32, #tpu.memory_space<vmem>>, vector<1x3xi32>
    %c2_i32 = arith.constant 2 : i32
    %1 = vector.broadcast %c2_i32 : i32 to vector<1x3xi32>
    %2 = arith.shli %0, %1 : vector<1x3xi32>
    %c0_1 = arith.constant 0 : index
    %c0_2 = arith.constant 0 : index
    %3 = vector.load %arg4[%c0_1, %c0_2] : memref<1x3xi32, #tpu.memory_space<vmem>>, vector<1x3xi32>
    tpu.vector_store %arg4[%c0_1, %c0_2], %2 {strides = array<i32>} : memref<1x3xi32, #tpu.memory_space<vmem>>, vector<1x3xi32>,
    %c0_3 = arith.constant 0 : index
    %c0_4 = arith.constant 0 : index
    %4 = vector.load %arg2[%c0_3, %c0_4] : memref<1x3xi32, #tpu.memory_space<vmem>>, vector<1x3xi32>
    %c3_i32 = arith.constant 3 : i32
    %5 = vector.broadcast %c3_i32 : i32 to vector<1x3xi32>
    %6 = arith.shrsi %4, %5 : vector<1x3xi32>
    %c0_5 = arith.constant 0 : index
    %c0_6 = arith.constant 0 : index
    %7 = vector.load %arg5[%c0_5, %c0_6] : memref<1x3xi32, #tpu.memory_space<vmem>>, vector<1x3xi32>
    tpu.vector_store %arg5[%c0_5, %c0_6], %6 {strides = array<i32>} : memref<1x3xi32, #tpu.memory_space<vmem>>, vector<1x3xi32>,
    %c0_7 = arith.constant 0 : index
    %c0_8 = arith.constant 0 : index
    %8 = vector.load %arg3[%c0_7, %c0_8] : memref<1x3xi32, #tpu.memory_space<vmem>>, vector<1x3xi32>
    %c1_i32 = arith.constant 1 : i32
    %9 = vector.broadcast %c1_i32 : i32 to vector<1x3xi32>
    %10 = arith.shli %8, %9 : vector<1x3xi32>
    %c0_9 = arith.constant 0 : index
    %c0_10 = arith.constant 0 : index
    %11 = vector.load %arg6[%c0_9, %c0_10] : memref<1x3xi32, #tpu.memory_space<vmem>>, vector<1x3xi32>
    tpu.vector_store %arg6[%c0_9, %c0_10], %10 {strides = array<i32>} : memref<1x3xi32, #tpu.memory_space<vmem>>, vector<1x3xi32>,
    %c0_11 = arith.constant 0 : index
    %c0_12 = arith.constant 0 : index
    %12 = vector.load %arg0[%c0_11, %c0_12] : memref<1x3xi32, #tpu.memory_space<vmem>>, vector<1x3xi32>
    %c4_i32 = arith.constant 4 : i32
    %13 = vector.broadcast %c4_i32 : i32 to vector<1x3xi32>
    %14 = arith.shrsi %12, %13 : vector<1x3xi32>
    %c0_13 = arith.constant 0 : index
    %c0_14 = arith.constant 0 : index
    %15 = vector.load %arg7[%c0_13, %c0_14] : memref<1x3xi32, #tpu.memory_space<vmem>>, vector<1x3xi32>
    tpu.vector_store %arg7[%c0_13, %c0_14], %14 {strides = array<i32>} : memref<1x3xi32, #tpu.memory_space<vmem>>, vector<1x3xi32>,
    return
  }
}

</mosaic_0001>

<llo_original>
// kernel: bitshift.1
$region0: #{bitshift.1}
  #allocation0 [shape = 'u32[]', space=smem, size = 0x4, offset = 0x4, fixed_abs, tag = 'smem constant byte address 0x4 - core index']
  #allocation1 [shape = 'u32[144,128]{1,0:T(1,128)}', space=vmem, size = 0x12000, scoped, tag = 'internal scratch']
  %s0 = inlined_call_operand.hbm [shape: s32[1,3], index: 0, kind: input, shape index: {}]
  %s1 = inlined_call_operand.vmem [shape: s32[1,3], index: 1, kind: input, shape index: {}]
  %s2 = inlined_call_operand.vmem [shape: s32[1,3], index: 2, kind: input, shape index: {}]
  %s3 = inlined_call_operand.vmem [shape: s32[1,3], index: 3, kind: input, shape index: {}]
  %s4 = inlined_call_operand.hbm [shape: s32[1,3], index: 4, kind: output, shape index: {0}]
  %s5 = inlined_call_operand.hbm [shape: s32[1,3], index: 5, kind: output, shape index: {1}]
  %s6 = inlined_call_operand.hbm [shape: s32[1,3], index: 6, kind: output, shape index: {2}]
  %s7 = inlined_call_operand.hbm [shape: s32[1,3], index: 7, kind: output, shape index: {3}]
  %8 = xla_tuple %s4, %s5, %s6, %s7
  %s9 = sld [smem:[#allocation0]]
  $region54: #{bitshift.1} parent=0
    _
  %s11 = ssub.s32 1, %s9
  %s12 = scalar_select 0, %s11, %s9
  $region1: #{bitshift.1} parent=0
    #allocation2 [shape = 'u8[512]{0}', space=vmem, size = 0x400, scoped, tag = 'input window, operand 0, single buffered']
    #allocation3 [shape = 's32[1]{0}', space=sflag, size = 0x4, scoped, tag = 'scoped memory for bitshift.1']
    #allocation4 [shape = 's32[1]{0}', space=sflag, size = 0x4, scoped, tag = 'scoped memory for bitshift.1']
    #allocation5 [shape = 'u8[512]{0}', space=vmem, size = 0x400, scoped, tag = 'output window, operand 0, single buffered']
    #allocation6 [shape = 'u8[512]{0}', space=vmem, size = 0x400, scoped, tag = 'output window, operand 1, single buffered']
    #allocation7 [shape = 's32[1]{0}', space=sflag, size = 0x4, scoped, tag = 'scoped memory for bitshift.1']
    #allocation8 [shape = 'u8[512]{0}', space=vmem, size = 0x400, scoped, tag = 'output window, operand 2, single buffered']
    #allocation9 [shape = 'u8[512]{0}', space=vmem, size = 0x400, scoped, tag = 'output window, operand 3, single buffered']
    #allocation10 [shape = 's32[1]{0}', space=sflag, size = 0x4, scoped, tag = 'scoped memory for bitshift.1']
    %13 = vsyncpa [#allocation3], 0
    %14 = vsyncpa [#allocation4], 0
    %15 = vsyncpa [#allocation7], 0
    %16 = vsyncpa [#allocation10], 0
    // Predicated region
    $region2: #{bitshift.1} parent=1 // pred_check
      _
    $region3: #{bitshift.1} parent=1 // pred_check_branch
      %18 = sbr.rel (0) target = $region5
    $region4: #{bitshift.1} parent=1 // pred_region
      %s20 = ssub.s32 16, 16
      %21 = vsyncadd [#allocation3], %s20
      %s23 = sshll.u32 [#allocation2], 4
      %s24 = int_to_ptr.vmem [resolvable:$true] %s23
      %26 = dma.hbm_to_vmem [thread:$0]  %s0, 16, %s24, [#allocation3]
    $region5: #{bitshift.1} parent=1 // pred_fallthru
      _
    // Predicated region
    $region6: #{bitshift.1} parent=1 // pred_check
      _
    $region7: #{bitshift.1} parent=1 // pred_check_branch
      %28 = sbr.rel (0) target = $region9
    $region8: #{bitshift.1} parent=1 // pred_region
      _
    $region9: #{bitshift.1} parent=1 // pred_fallthru
      _
    // Predicated region
    $region10: #{bitshift.1} parent=1 // pred_check
      _
    $region11: #{bitshift.1} parent=1 // pred_check_branch
      %30 = sbr.rel (0) target = $region13
    $region12: #{bitshift.1} parent=1 // pred_region
      _
    $region13: #{bitshift.1} parent=1 // pred_fallthru
      _
    // Predicated region
    $region14: #{bitshift.1} parent=1 // pred_check
      _
    $region15: #{bitshift.1} parent=1 // pred_check_branch
      %32 = sbr.rel (0) target = $region17
    $region16: #{bitshift.1} parent=1 // pred_region
      _
    $region17: #{bitshift.1} parent=1 // pred_fallthru
      _
    // Predicated region
    $region18: #{bitshift.1} parent=1 // pred_check
      _
    $region19: #{bitshift.1} parent=1 // pred_check_branch
      %34 = sbr.rel (0) target = $region21
    $region20: #{bitshift.1} parent=1 // pred_region
      %35 = dma.done [#allocation3], 16
    $region21: #{bitshift.1} parent=1 // pred_fallthru
      _
    %v36 = vld [vmem:[%s1] sm:$0x1]
    %v37 = vshll.u32 %v36, 2
    %vm38 = vcmask 16384
    %39 = vst.msk [vmem:[#allocation5] sm:$0x1] %vm38, %v37
    %v40 = vld [vmem:[%s2] sm:$0x1]
    %v41 = vshra.s32 %v40, 3
    %42 = vst.msk [vmem:[#allocation6] sm:$0x1] %vm38, %v41
    %v43 = vld [vmem:[%s3] sm:$0x1]
    %v44 = vshll.u32 %v43, 1
    %45 = vst.msk [vmem:[#allocation8] sm:$0x1] %vm38, %v44
    %v46 = vld [vmem:[#allocation2] sm:$0x1]
    %v47 = vshra.s32 %v46, 4
    %48 = vst.msk [vmem:[#allocation9] sm:$0x1] %vm38, %v47
    // Predicated region
    $region22: #{bitshift.1} parent=1 // pred_check
      _
    $region23: #{bitshift.1} parent=1 // pred_check_branch
      %50 = sbr.rel (0) target = $region25
    $region24: #{bitshift.1} parent=1 // pred_region
      %s52 = ssub.s32 16, 16
      %53 = vsyncadd [#allocation4], %s52
      %s55 = sshll.u32 [#allocation5], 4
      %s56 = int_to_ptr.vmem [resolvable:$true] %s55
      %58 = dma.vmem_to_hbm [thread:$0]  %s56, 16, %s4, [#allocation4]
    $region25: #{bitshift.1} parent=1 // pred_fallthru
      _
    // Predicated region
    $region26: #{bitshift.1} parent=1 // pred_check
      _
    $region27: #{bitshift.1} parent=1 // pred_check_branch
      %60 = sbr.rel (0) target = $region29
    $region28: #{bitshift.1} parent=1 // pred_region
      %s62 = ssub.s32 16, 16
      %63 = vsyncadd [#allocation7], %s62
      %s65 = sshll.u32 [#allocation6], 4
      %s66 = int_to_ptr.vmem [resolvable:$true] %s65
      %68 = dma.vmem_to_hbm [thread:$0]  %s66, 16, %s5, [#allocation7]
    $region29: #{bitshift.1} parent=1 // pred_fallthru
      _
    // Predicated region
    $region30: #{bitshift.1} parent=1 // pred_check
      _
    $region31: #{bitshift.1} parent=1 // pred_check_branch
      %70 = sbr.rel (0) target = $region33
    $region32: #{bitshift.1} parent=1 // pred_region
      %s72 = ssub.s32 16, 16
      %73 = vsyncadd [#allocation7], %s72
      %s75 = sshll.u32 [#allocation8], 4
      %s76 = int_to_ptr.vmem [resolvable:$true] %s75
      %78 = dma.vmem_to_hbm [thread:$0]  %s76, 16, %s6, [#allocation7]
    $region33: #{bitshift.1} parent=1 // pred_fallthru
      _
    // Predicated region
    $region34: #{bitshift.1} parent=1 // pred_check
      _
    $region35: #{bitshift.1} parent=1 // pred_check_branch
      %80 = sbr.rel (0) target = $region37
    $region36: #{bitshift.1} parent=1 // pred_region
      %s82 = ssub.s32 16, 16
      %83 = vsyncadd [#allocation10], %s82
      %s85 = sshll.u32 [#allocation9], 4
      %s86 = int_to_ptr.vmem [resolvable:$true] %s85
      %88 = dma.vmem_to_hbm [thread:$0]  %s86, 16, %s7, [#allocation10]
    $region37: #{bitshift.1} parent=1 // pred_fallthru
      _
    // Predicated region
    $region38: #{bitshift.1} parent=1 // pred_check
      _
    $region39: #{bitshift.1} parent=1 // pred_check_branch
      %90 = sbr.rel (0) target = $region41
    $region40: #{bitshift.1} parent=1 // pred_region
      %91 = dma.done [#allocation4], 16
    $region41: #{bitshift.1} parent=1 // pred_fallthru
      _
    // Predicated region
    $region42: #{bitshift.1} parent=1 // pred_check
      _
    $region43: #{bitshift.1} parent=1 // pred_check_branch
      %93 = sbr.rel (0) target = $region45
    $region44: #{bitshift.1} parent=1 // pred_region
      %94 = dma.done [#allocation7], 16
    $region45: #{bitshift.1} parent=1 // pred_fallthru
      _
    // Predicated region
    $region46: #{bitshift.1} parent=1 // pred_check
      _
    $region47: #{bitshift.1} parent=1 // pred_check_branch
      %96 = sbr.rel (0) target = $region49
    $region48: #{bitshift.1} parent=1 // pred_region
      %97 = dma.done [#allocation7], 16
    $region49: #{bitshift.1} parent=1 // pred_fallthru
      _
    // Predicated region
    $region50: #{bitshift.1} parent=1 // pred_check
      _
    $region51: #{bitshift.1} parent=1 // pred_check_branch
      %99 = sbr.rel (0) target = $region53
    $region52: #{bitshift.1} parent=1 // pred_region
      %100 = dma.done [#allocation10], 16
    $region53: #{bitshift.1} parent=1 // pred_fallthru
      _
    %101 = vsyncpa [#allocation3], 1
    %102 = vsyncpa [#allocation4], 1
    %103 = vsyncpa [#allocation7], 1
    %104 = vsyncpa [#allocation10], 1

</llo_original>
